<compile_context>
chip_gen: v5e
topology: v5e:2x2
jax: 0.10.0
libtpu: 0.0.40
codegen_flags: <defaults>
</compile_context>

<pallas_src>
import functools

import jax
import jax.numpy as jnp
from jax.experimental import pallas as pl
from jax.experimental.pallas import tpu as pltpu


def _round_up(v, m):
    return ((v + m - 1) // m) * m


def poly2_kernel(xT_ref, w2t_ref, w0_ref, o_ref, acc_ref, *, tn):
    """Grid = (n, b): n = w2-column tile (reduction, OUTER), b = batch tile (INNER).

    xT_ref  : (F_pad, TB)   x^T for batch tile b (full feature dim)
    w2t_ref : (TN, F_pad)   rows n*TN .. n*TN+TN of w2^T (== columns of w2)
    w0_ref  : (1, 1)        global bias, SMEM
    o_ref   : (1, TB)       lane-dense logits (batch on the lane axis)
    acc_ref : (NB, 1, TB)   f32 running sums, one slice per batch tile
    """
    n = pl.program_id(0)
    b = pl.program_id(1)

    # (x @ w2)[:, block]^T = w2^T[block, :] @ x^T  -> (TN, TB), f32 accumulation.
    xw2_t = jnp.dot(w2t_ref[...], xT_ref[...], preferred_element_type=jnp.float32)

    # Matching feature rows of x^T for this column block: x[:, block]^T -> (TN, TB).
    start = pl.multiple_of(n * tn, tn)
    x_cols_t = xT_ref[pl.ds(start, tn), :].astype(jnp.float32)

    # Partial of  sum_j x_j * (x @ w2)_j  over this column block -> (1, TB).
    partial = jnp.sum(x_cols_t * xw2_t, axis=0, keepdims=True)

    @pl.when(n == 0)
    def _():
        acc_ref[b] = partial

    @pl.when(n > 0)
    def _():
        acc_ref[b] = acc_ref[b] + partial

    @pl.when(n == pl.num_programs(0) - 1)
    def _():
        o_ref[...] = jax.nn.sigmoid(w0_ref[0, 0] + acc_ref[b]).astype(o_ref.dtype)


def poly2_prepare_weights(w0, w1, w2, *, use_bf16=True):
    """One-time weight prep (off the per-forward hot path): pad, fold w1, transpose."""
    F = w2.shape[0]
    f_pad = _round_up(F + 1, 128)          # +1 guarantees a spare column for the w1 fold
    w2p = jnp.zeros((f_pad, f_pad), jnp.float32)
    w2p = w2p.at[:F, :F].set(w2.astype(jnp.float32))
    w2p = w2p.at[:F, F].set(w1[:, 0].astype(jnp.float32))   # x_i * 1 * w1_i == (x @ w1)
    w2t = w2p.T                                              # one-time transpose -> MXU-native
    if use_bf16:
        w2t = w2t.astype(jnp.bfloat16)                       # f32 accumulation stays in-kernel
    return {
        "w0": w0.astype(jnp.float32).reshape(1, 1),
        "w2t": w2t,
        "n_features": F,
        "f_pad": f_pad,
        "use_bf16": use_bf16,
    }


def poly2_forward(x, weights, *, vmem_budget_bytes=48 * 1024 * 1024):
    B, F = x.shape
    assert F == weights["n_features"]
    f_pad = weights["f_pad"]
    w2t = weights["w2t"]
    w0 = weights["w0"]
    use_bf16 = weights["use_bf16"]
    elt = 2 if use_bf16 else 4

    # Batch tile: floor at 128 lanes (lane-dense output, full MXU N-width);
    # default 256, 512 when streaming bf16 (more flops per streamed w2 byte).
    tb = 512 if use_bf16 else 256
    if B <= tb:
        tb = max(128, _round_up(B, 128))
    b_pad = _round_up(B, tb)

    # w2 column tile: as large as fits next to the x^T block (both auto
    # double-buffered by the BlockSpec pipeline) inside a v7x-safe VMEM budget.
    tn = f_pad
    while tn % 2 == 0 and tn // 2 >= 128 and 2 * elt * f_pad * (tn + tb) > vmem_budget_bytes:
        tn //= 2

    n_btiles = b_pad // tb
    grid = (f_pad // tn, b_pad // tb)   # reduction axis OUTER -> w2 streamed once per call

    # Per-call activation plumbing (zero padding is exact for this reduction);
    # padded feature column F is the constant-1 feature that absorbs w1.
    x_pad = jnp.zeros((b_pad, f_pad), jnp.float32)
    x_pad = x_pad.at[:B, :F].set(x.astype(jnp.float32))
    x_pad = x_pad.at[:B, F].set(1.0)
    xT = x_pad.T
    if use_bf16:
        xT = xT.astype(jnp.bfloat16)

    # VMEM limit derived from the actual working set (not hard-coded).
    ws_bytes = 2 * elt * f_pad * (tn + tb)        # double-buffered w2^T + x^T tiles
    ws_bytes += 4 * n_btiles * 8 * tb             # accumulator scratch (sublane-padded)
    ws_bytes += 2 * 4 * 8 * tb                    # double-buffered output block
    vmem_limit = int(min(max(ws_bytes * 5 // 4, 32 * 1024 * 1024), 96 * 1024 * 1024))

    out = pl.pallas_call(
        functools.partial(poly2_kernel, tn=tn),
        out_shape=jax.ShapeDtypeStruct((1, b_pad), jnp.float32),
        grid=grid,
        in_specs=[
            pl.BlockSpec((f_pad, tb), lambda n, b: (0, b)),        # x^T (batch tile)
            pl.BlockSpec((tn, f_pad), lambda n, b: (n, 0)),        # w2^T row tile
            pl.BlockSpec(memory_space=pltpu.MemorySpace.SMEM),     # w0 scalar
        ],
        out_specs=pl.BlockSpec((1, tb), lambda n, b: (0, b)),
        scratch_shapes=[pltpu.VMEM((n_btiles, 1, tb), jnp.float32)],
        compiler_params=pltpu.CompilerParams(
            dimension_semantics=("arbitrary", "arbitrary"),
            vmem_limit_bytes=vmem_limit,
        ),
    )(xT, w2t, w0)

    return out[0, :B].reshape(B, 1)


def xavier_uniform(key, shape):
    # PyTorch xavier_uniform_ for 2-D: fan_in = shape[1], fan_out = shape[0]
    fan_out, fan_in = shape
    bound = (6.0 / (fan_in + fan_out)) ** 0.5
    return jax.random.uniform(key, shape, jnp.float32, -bound, bound)


def poly2_ref(x, w0, w1, w2):
    lr = w0 + x @ w1
    cross = jnp.sum((x[:, :, None] * x[:, None, :]) * w2, axis=(1, 2))[:, None]
    return jax.nn.sigmoid(lr + cross)


if __name__ == "__main__":
    B, F = 8, 16  # batch, n_features

    key = jax.random.PRNGKey(0)
    kx, k0, k1, k2 = jax.random.split(key, 4)

    x = jax.random.normal(kx, (B, F), dtype=jnp.float32)
    w0 = xavier_uniform(k0, (1, 1))
    w1 = xavier_uniform(k1, (F, 1))
    w2 = xavier_uniform(k2, (F, F))

    # bf16 streaming path (production default): bf16 x bf16 products are exact in
    # f32, so this checks tightly against an f32 reference on bf16-rounded inputs.
    weights_bf16 = poly2_prepare_weights(w0, w1, w2, use_bf16=True)
    out_bf16 = jax.block_until_ready(poly2_forward(x, weights_bf16))
    x_r = x.astype(jnp.bfloat16).astype(jnp.float32)
    w1_r = w1.astype(jnp.bfloat16).astype(jnp.float32)
    w2_r = w2.astype(jnp.bfloat16).astype(jnp.float32)
    ref_bf16 = poly2_ref(x_r, w0, w1_r, w2_r)
    assert out_bf16.shape == (B, 1)
    assert jnp.allclose(out_bf16, ref_bf16, atol=1e-4, rtol=1e-4)

    # f32 streaming path. Tolerance is loose because the in-kernel f32 matmul uses
    # the MXU's default precision (may be bf16-pass based); still a structural check.
    weights_f32 = poly2_prepare_weights(w0, w1, w2, use_bf16=False)
    out_f32 = jax.block_until_ready(poly2_forward(x, weights_f32))
    ref_f32 = poly2_ref(x, w0, w1, w2)
    assert out_f32.shape == (B, 1)
    assert jnp.allclose(out_f32, ref_f32, atol=2e-2, rtol=2e-2)

    print("KERNEL_OK")
</pallas_src>

<mosaic_0001>
module attributes {stable_mosaic.version = 11 : i64} {
  func.func @poly2_kernel(%arg0: i32, %arg1: i32, %arg2: memref<128x128xbf16, #tpu.memory_space<vmem>>, %arg3: memref<128x128xbf16, #tpu.memory_space<vmem>>, %arg4: memref<1x1xf32, #tpu.memory_space<smem>>, %arg5: memref<1x128xf32, #tpu.memory_space<vmem>>, %arg6: memref<1x1x128xf32, #tpu.memory_space<vmem>>) attributes {dimension_semantics = [#tpu.dimension_semantics<arbitrary>, #tpu.dimension_semantics<arbitrary>], iteration_bounds = array<i64: 1, 1>, scalar_prefetch = 0 : i64, scratch_operands = 1 : i64, tpu.core_type = #tpu.core_type<tc>, window_params = [{transform_indices = @transform_0, window_bounds = array<i64: 128, 128>}, {transform_indices = @transform_1, window_bounds = array<i64: 128, 128>}, {transform_indices = @transform_2, window_bounds = array<i64: 1, 1>}, {transform_indices = @transform_3, window_bounds = array<i64: 1, 128>}]} {
    %c0 = arith.constant 0 : index
    %c0_0 = arith.constant 0 : index
    %0 = vector.load %arg3[%c0, %c0_0] : memref<128x128xbf16, #tpu.memory_space<vmem>>, vector<128x128xbf16>
    %c0_1 = arith.constant 0 : index
    %c0_2 = arith.constant 0 : index
    %1 = vector.load %arg2[%c0_1, %c0_2] : memref<128x128xbf16, #tpu.memory_space<vmem>>, vector<128x128xbf16>
    %cst = arith.constant dense<0.000000e+00> : vector<128x128xf32>
    %2 = tpu.matmul %0, %1, %cst {dimension_numbers = #tpu.dot_dimension_numbers<[1], [0], [0], [1], [0, 0, 1, 1], [], []>} : vector<128x128xbf16>, vector<128x128xbf16>, vector<128x128xf32> -> vector<128x128xf32>
    %c128_i32 = arith.constant 128 : i32
    %3 = arith.muli %arg0, %c128_i32 : i32
    %4 = tpu.assume_multiple %3, 128 : i32
    %5 = arith.index_cast %4 : i32 to index
    %c0_3 = arith.constant 0 : index
    %6 = vector.load %arg2[%5, %c0_3] : memref<128x128xbf16, #tpu.memory_space<vmem>>, vector<128x128xbf16>
    %7 = arith.extf %6 : vector<128x128xbf16> to vector<128x128xf32>
    %8 = arith.mulf %7, %2 : vector<128x128xf32>
    %cst_4 = arith.constant dense<0.000000e+00> : vector<128xf32>
    %9 = vector.multi_reduction <add>, %8, %cst_4 [0] : vector<128x128xf32> to vector<128xf32>
    %10 = vector.shape_cast %9 : vector<128xf32> to vector<1x128xf32>
    %c0_i32 = arith.constant 0 : i32
    %11 = arith.cmpi eq, %arg0, %c0_i32 : i32
    %12 = arith.extui %11 : i1 to i32
    %c0_i32_5 = arith.constant 0 : i32
    %13 = arith.cmpi ne, %12, %c0_i32_5 : i32
    scf.if %13 {
      %20 = arith.index_cast %arg1 : i32 to index
      %c0_10 = arith.constant 0 : index
      %c0_11 = arith.constant 0 : index
      %21 = vector.load %arg6[%20, %c0_10, %c0_11] : memref<1x1x128xf32, #tpu.memory_space<vmem>>, vector<1x1x128xf32>
      %22 = vector.shape_cast %21 : vector<1x1x128xf32> to vector<1x128xf32>
      %23 = vector.shape_cast %10 : vector<1x128xf32> to vector<1x1x128xf32>
      tpu.vector_store %arg6[%20, %c0_10, %c0_11], %23 {strides = array<i32>} : memref<1x1x128xf32, #tpu.memory_space<vmem>>, vector<1x1x128xf32>,
    } else {
    }
    %c0_i32_6 = arith.constant 0 : i32
    %14 = arith.cmpi sgt, %arg0, %c0_i32_6 : i32
    %15 = arith.extui %14 : i1 to i32
    %c0_i32_7 = arith.constant 0 : i32
    %16 = arith.cmpi ne, %15, %c0_i32_7 : i32
    scf.if %16 {
      %20 = arith.index_cast %arg1 : i32 to index
      %c0_10 = arith.constant 0 : index
      %c0_11 = arith.constant 0 : index
      %21 = vector.load %arg6[%20, %c0_10, %c0_11] : memref<1x1x128xf32, #tpu.memory_space<vmem>>, vector<1x1x128xf32>
      %22 = vector.shape_cast %21 : vector<1x1x128xf32> to vector<1x128xf32>
      %23 = arith.addf %22, %10 : vector<1x128xf32>
      %24 = arith.index_cast %arg1 : i32 to index
      %c0_12 = arith.constant 0 : index
      %c0_13 = arith.constant 0 : index
      %25 = vector.load %arg6[%24, %c0_12, %c0_13] : memref<1x1x128xf32, #tpu.memory_space<vmem>>, vector<1x1x128xf32>
      %26 = vector.shape_cast %25 : vector<1x1x128xf32> to vector<1x128xf32>
      %27 = vector.shape_cast %23 : vector<1x128xf32> to vector<1x1x128xf32>
      tpu.vector_store %arg6[%24, %c0_12, %c0_13], %27 {strides = array<i32>} : memref<1x1x128xf32, #tpu.memory_space<vmem>>, vector<1x1x128xf32>,
    } else {
    }
    %c0_i32_8 = arith.constant 0 : i32
    %17 = arith.cmpi eq, %arg0, %c0_i32_8 : i32
    %18 = arith.extui %17 : i1 to i32
    %c0_i32_9 = arith.constant 0 : i32
    %19 = arith.cmpi ne, %18, %c0_i32_9 : i32
    scf.if %19 {
      %c0_10 = arith.constant 0 : index
      %c0_11 = arith.constant 0 : index
      %20 = memref.load %arg4[%c0_10, %c0_11] : memref<1x1xf32, #tpu.memory_space<smem>>
      %21 = arith.index_cast %arg1 : i32 to index
      %c0_12 = arith.constant 0 : index
      %c0_13 = arith.constant 0 : index
      %22 = vector.load %arg6[%21, %c0_12, %c0_13] : memref<1x1x128xf32, #tpu.memory_space<vmem>>, vector<1x1x128xf32>
      %23 = vector.shape_cast %22 : vector<1x1x128xf32> to vector<1x128xf32>
      %24 = vector.broadcast %20 : f32 to vector<1x128xf32>
      %25 = arith.addf %24, %23 : vector<1x128xf32>
      %26 = arith.negf %25 : vector<1x128xf32>
      %27 = math.exp %26 : vector<1x128xf32>
      %cst_14 = arith.constant 1.000000e+00 : f32
      %28 = vector.broadcast %cst_14 : f32 to vector<1x128xf32>
      %29 = arith.addf %28, %27 : vector<1x128xf32>
      %30 = arith.divf %28, %29 : vector<1x128xf32>
      %c0_15 = arith.constant 0 : index
      %c0_16 = arith.constant 0 : index
      %31 = vector.load %arg5[%c0_15, %c0_16] : memref<1x128xf32, #tpu.memory_space<vmem>>, vector<1x128xf32>
      tpu.vector_store %arg5[%c0_15, %c0_16], %30 {strides = array<i32>} : memref<1x128xf32, #tpu.memory_space<vmem>>, vector<1x128xf32>,
    } else {
    }
    return
  }
  func.func @transform_0(%arg0: i32, %arg1: i32) -> (i32, i32) {
    %c0_i32 = arith.constant 0 : i32
    %c0_i32_0 = arith.constant 0 : i32
    return %c0_i32, %arg1 : i32, i32
  }
  func.func @transform_1(%arg0: i32, %arg1: i32) -> (i32, i32) {
    %c0_i32 = arith.constant 0 : i32
    %c0_i32_0 = arith.constant 0 : i32
    return %arg0, %c0_i32 : i32, i32
  }
  func.func @transform_2(%arg0: i32, %arg1: i32) -> (i32, i32) {
    %c0_i32 = arith.constant 0 : i32
    %c0_i32_0 = arith.constant 0 : i32
    %c0_i32_1 = arith.constant 0 : i32
    return %c0_i32, %c0_i32_0 : i32, i32
  }
  func.func @transform_3(%arg0: i32, %arg1: i32) -> (i32, i32) {
    %c0_i32 = arith.constant 0 : i32
    %c0_i32_0 = arith.constant 0 : i32
    return %c0_i32, %arg1 : i32, i32
  }
}

</mosaic_0001>

<llo_original>
// kernel: tpu_custom_call.1
$region0: #{tpu_custom_call.1}
  #allocation0 [shape = 'u32[]', space=smem, size = 0x4, offset = 0x4, fixed_abs, tag = 'smem constant byte address 0x4 - core index']
  #allocation1 [shape = 'u32[72,128]{1,0:T(1,128)}', space=vmem, size = 0x9000, scoped, tag = 'internal scratch']
  #allocation2 [shape = 'f32[1,1,128]{2,1,0:T(1,128)}', space=vmem, size = 0x200, scoped, tag = 'scratch operand']
  #allocation3 [shape = 'f32[1,1]{1,0:T(1,128)S(6)}', space=smem, size = 0x200, scoped, tag = 'scoped memory for tpu_custom_call.1']
  %s0 = inlined_call_operand.hbm [shape: bf16[128,128], index: 0, kind: input, shape index: {}]
  %s1 = inlined_call_operand.hbm [shape: bf16[128,128], index: 1, kind: input, shape index: {}]
  %s2 = inlined_call_operand.<no memory space> [shape: f32[1,1], index: 2, kind: input, shape index: {}]
  %s3 = inlined_call_operand.hbm [shape: f32[1,128], index: 3, kind: output, shape index: {}]
  %s4 = sld [smem:[#allocation0]]
  $region42: #{tpu_custom_call.1} parent=0
    _
  %s6 = ssub.s32 1, %s4
  %s7 = scalar_select 0, %s6, %s4
  %8 = sst [smem:[#allocation3]] %s2
  $region1: #{tpu_custom_call.1} parent=0
    #allocation4 [shape = 'u8[32768]{0}', space=vmem, size = 0x8000, scoped, tag = 'input window, operand 0, single buffered']
    #allocation5 [shape = 's32[1]{0}', space=sflag, size = 0x4, scoped, tag = 'scoped memory for tpu_custom_call.1']
    #allocation6 [shape = 's32[1]{0}', space=sflag, size = 0x4, scoped, tag = 'scoped memory for tpu_custom_call.1']
    #allocation7 [shape = 'u8[32768]{0}', space=vmem, size = 0x8000, scoped, tag = 'input window, operand 1, single buffered']
    #allocation8 [shape = 's32[1]{0}', space=sflag, size = 0x4, scoped, tag = 'scoped memory for tpu_custom_call.1']
    #allocation9 [shape = 'u8[512]{0}', space=vmem, size = 0x400, scoped, tag = 'output window, operand 0, single buffered']
    %9 = vsyncpa [#allocation5], 0
    %10 = vsyncpa [#allocation8], 0
    %11 = vsyncpa [#allocation6], 0
    // Predicated region
    $region2: #{tpu_custom_call.1} parent=1 // pred_check
      _
    $region3: #{tpu_custom_call.1} parent=1 // pred_check_branch
      %13 = sbr.rel (0) target = $region5
    $region4: #{tpu_custom_call.1} parent=1 // pred_region
      %15 = vsyncadd [#allocation5], 0
      %s16 = sshll.u32 %s0, 4
      %s17 = int_to_ptr.hbm [resolvable:$true] %s16
      %s18 = sshll.u32 [#allocation4], 4
      %s19 = int_to_ptr.vmem [resolvable:$true] %s18
      %24 = dma.hbm_to_vmem [thread:$0]  %s17, 1024, %s19, [#allocation5], 64, 64, 4
    $region5: #{tpu_custom_call.1} parent=1 // pred_fallthru
      _
    // Predicated region
    $region6: #{tpu_custom_call.1} parent=1 // pred_check
      _
    $region7: #{tpu_custom_call.1} parent=1 // pred_check_branch
      %26 = sbr.rel (0) target = $region9
    $region8: #{tpu_custom_call.1} parent=1 // pred_region
      %28 = vsyncadd [#allocation8], 0
      %s29 = sshll.u32 %s1, 4
      %s30 = int_to_ptr.hbm [resolvable:$true] %s29
      %s31 = sshll.u32 [#allocation7], 4
      %s32 = int_to_ptr.vmem [resolvable:$true] %s31
      %37 = dma.hbm_to_vmem [thread:$0]  %s30, 1024, %s32, [#allocation8], 64, 64, 4
    $region9: #{tpu_custom_call.1} parent=1 // pred_fallthru
      _
    // Predicated region
    $region10: #{tpu_custom_call.1} parent=1 // pred_check
      _
    $region11: #{tpu_custom_call.1} parent=1 // pred_check_branch
      %39 = sbr.rel (0) target = $region13
    $region12: #{tpu_custom_call.1} parent=1 // pred_region
      _
    $region13: #{tpu_custom_call.1} parent=1 // pred_fallthru
      _
    // Predicated region
    $region14: #{tpu_custom_call.1} parent=1 // pred_check
      _
    $region15: #{tpu_custom_call.1} parent=1 // pred_check_branch
      %41 = sbr.rel (0) target = $region17
    $region16: #{tpu_custom_call.1} parent=1 // pred_region
      %43 = dma.done [#allocation5], 1024
    $region17: #{tpu_custom_call.1} parent=1 // pred_fallthru
      _
    // Predicated region
    $region18: #{tpu_custom_call.1} parent=1 // pred_check
      _
    $region19: #{tpu_custom_call.1} parent=1 // pred_check_branch
      %45 = sbr.rel (0) target = $region21
    $region20: #{tpu_custom_call.1} parent=1 // pred_region
      %47 = dma.done [#allocation8], 1024
    $region21: #{tpu_custom_call.1} parent=1 // pred_fallthru
      _
    %v48 = vld [vmem:[#allocation7] sm:$0xf]
    %v49 = vld [vmem:[#allocation7 + $0x4] sm:$0xf]
    %v50 = vld [vmem:[#allocation7 + $0x8] sm:$0xf]
    %v51 = vld [vmem:[#allocation7 + $0xc] sm:$0xf]
    %v52 = vld [vmem:[#allocation7 + $0x10] sm:$0xf]
    %v53 = vld [vmem:[#allocation7 + $0x14] sm:$0xf]
    %v54 = vld [vmem:[#allocation7 + $0x18] sm:$0xf]
    %v55 = vld [vmem:[#allocation7 + $0x1c] sm:$0xf]
    %v56 = vld [vmem:[#allocation7 + $0x20] sm:$0xf]
    %v57 = vld [vmem:[#allocation7 + $0x24] sm:$0xf]
    %v58 = vld [vmem:[#allocation7 + $0x28] sm:$0xf]
    %v59 = vld [vmem:[#allocation7 + $0x2c] sm:$0xf]
    %v60 = vld [vmem:[#allocation7 + $0x30] sm:$0xf]
    %v61 = vld [vmem:[#allocation7 + $0x34] sm:$0xf]
    %v62 = vld [vmem:[#allocation7 + $0x38] sm:$0xf]
    %v63 = vld [vmem:[#allocation7 + $0x3c] sm:$0xf]
    %v64 = vld [vmem:[#allocation4] sm:$0xf]
    %v65 = vld [vmem:[#allocation4 + $0x4] sm:$0xf]
    %v66 = vld [vmem:[#allocation4 + $0x8] sm:$0xf]
    %v67 = vld [vmem:[#allocation4 + $0xc] sm:$0xf]
    %v68 = vld [vmem:[#allocation4 + $0x10] sm:$0xf]
    %v69 = vld [vmem:[#allocation4 + $0x14] sm:$0xf]
    %v70 = vld [vmem:[#allocation4 + $0x18] sm:$0xf]
    %v71 = vld [vmem:[#allocation4 + $0x1c] sm:$0xf]
    %v72 = vld [vmem:[#allocation4 + $0x20] sm:$0xf]
    %v73 = vld [vmem:[#allocation4 + $0x24] sm:$0xf]
    %v74 = vld [vmem:[#allocation4 + $0x28] sm:$0xf]
    %v75 = vld [vmem:[#allocation4 + $0x2c] sm:$0xf]
    %v76 = vld [vmem:[#allocation4 + $0x30] sm:$0xf]
    %v77 = vld [vmem:[#allocation4 + $0x34] sm:$0xf]
    %v78 = vld [vmem:[#allocation4 + $0x38] sm:$0xf]
    %v79 = vld [vmem:[#allocation4 + $0x3c] sm:$0xf]
    %v96 = vunpack.c.l.b16 %v48
    %v97 = vunpack.c.l.b16 %v49
    %v98 = vunpack.c.l.b16 %v50
    %v99 = vunpack.c.l.b16 %v51
    %v100 = vunpack.c.l.b16 %v52
    %v101 = vunpack.c.l.b16 %v53
    %v102 = vunpack.c.l.b16 %v54
    %v103 = vunpack.c.l.b16 %v55
    %v104 = vunpack.c.l.b16 %v56
    %v105 = vunpack.c.l.b16 %v57
    %v106 = vunpack.c.l.b16 %v58
    %v107 = vunpack.c.l.b16 %v59
    %v108 = vunpack.c.l.b16 %v60
    %v109 = vunpack.c.l.b16 %v61
    %v110 = vunpack.c.l.b16 %v62
    %v111 = vunpack.c.l.b16 %v63
    %v112 = vpack.c.b16 %v97, %v96
    %v113 = vpack.c.b16 %v99, %v98
    %v114 = vpack.c.b16 %v101, %v100
    %v115 = vpack.c.b16 %v103, %v102
    %v116 = vpack.c.b16 %v105, %v104
    %v117 = vpack.c.b16 %v107, %v106
    %v118 = vpack.c.b16 %v109, %v108
    %v119 = vpack.c.b16 %v111, %v110
    %v144 = vunpack.c.l.b16 %v64
    %v145 = vunpack.c.l.b16 %v65
    %v146 = vunpack.c.l.b16 %v66
    %v147 = vunpack.c.l.b16 %v67
    %v148 = vunpack.c.l.b16 %v68
    %v149 = vunpack.c.l.b16 %v69
    %v150 = vunpack.c.l.b16 %v70
    %v151 = vunpack.c.l.b16 %v71
    %v152 = vunpack.c.l.b16 %v72
    %v153 = vunpack.c.l.b16 %v73
    %v154 = vunpack.c.l.b16 %v74
    %v155 = vunpack.c.l.b16 %v75
    %v156 = vunpack.c.l.b16 %v76
    %v157 = vunpack.c.l.b16 %v77
    %v158 = vunpack.c.l.b16 %v78
    %v159 = vunpack.c.l.b16 %v79
    %v160 = vpack.c.b16 %v145, %v144
    %v161 = vpack.c.b16 %v147, %v146
    %v162 = vpack.c.b16 %v149, %v148
    %v163 = vpack.c.b16 %v151, %v150
    %v164 = vpack.c.b16 %v153, %v152
    %v165 = vpack.c.b16 %v155, %v154
    %v166 = vpack.c.b16 %v157, %v156
    %v167 = vpack.c.b16 %v159, %v158
    %176 = vmatpush.bf16.msra.mxu0 %v167
    %177 = vmatpush.bf16.msra.mxu0 %v166
    %178 = vmatpush.bf16.msra.mxu0 %v165
    %179 = vmatpush.bf16.msra.mxu0 %v164
    %180 = vmatpush.bf16.msra.mxu0 %v163
    %181 = vmatpush.bf16.msra.mxu0 %v162
    %182 = vmatpush.bf16.msra.mxu0 %v161
    %183 = vmatpush.bf16.msra.mxu0 %v160
    %184 = vmatmul.bf16.gmra.mxu0 %v112
    %v185 = vpop.f32.mrf.mxu0
    %v186 = vadd.f32 0.0, %v185
    %v187 = vpop.f32.mrf.mxu0
    %v188 = vadd.f32 0.0, %v187
    %189 = vmatmul.bf16.gmra.mxu0 %v113
    %v190 = vpop.f32.mrf.mxu0
    %v191 = vadd.f32 0.0, %v190
    %v192 = vpop.f32.mrf.mxu0
    %v193 = vadd.f32 0.0, %v192
    %194 = vmatmul.bf16.gmra.mxu0 %v114
    %v195 = vpop.f32.mrf.mxu0
    %v196 = vadd.f32 0.0, %v195
    %v197 = vpop.f32.mrf.mxu0
    %v198 = vadd.f32 0.0, %v197
    %199 = vmatmul.bf16.gmra.mxu0 %v115
    %v200 = vpop.f32.mrf.mxu0
    %v201 = vadd.f32 0.0, %v200
    %v202 = vpop.f32.mrf.mxu0
    %v203 = vadd.f32 0.0, %v202
    %204 = vmatmul.bf16.gmra.mxu0 %v116
    %v205 = vpop.f32.mrf.mxu0
    %v206 = vadd.f32 0.0, %v205
    %v207 = vpop.f32.mrf.mxu0
    %v208 = vadd.f32 0.0, %v207
    %209 = vmatmul.bf16.gmra.mxu0 %v117
    %v210 = vpop.f32.mrf.mxu0
    %v211 = vadd.f32 0.0, %v210
    %v212 = vpop.f32.mrf.mxu0
    %v213 = vadd.f32 0.0, %v212
    %214 = vmatmul.bf16.gmra.mxu0 %v118
    %v215 = vpop.f32.mrf.mxu0
    %v216 = vadd.f32 0.0, %v215
    %v217 = vpop.f32.mrf.mxu0
    %v218 = vadd.f32 0.0, %v217
    %219 = vmatmul.bf16.gmra.mxu0 %v119
    %v220 = vpop.f32.mrf.mxu0
    %v221 = vadd.f32 0.0, %v220
    %v222 = vpop.f32.mrf.mxu0
    %v223 = vadd.f32 0.0, %v222
    %224 = vdwg.mxu0
    %s225 = smul.u32 0, 128
    %s226 = sshra.s32 %s225, 3
    %s227 = sand.u32 %s225, 7
    %s228 = smul.addr %s226, 4
    %s229 = scalar_lea.vmem [#allocation4], %s228
    %v230 = vld [vmem:[%s229] sm:$0xf]
    %v231 = vld [vmem:[%s229 + $0x4] sm:$0xf]
    %v232 = vld [vmem:[%s229 + $0x8] sm:$0xf]
    %v233 = vld [vmem:[%s229 + $0xc] sm:$0xf]
    %v234 = vld [vmem:[%s229 + $0x10] sm:$0xf]
    %v235 = vld [vmem:[%s229 + $0x14] sm:$0xf]
    %v236 = vld [vmem:[%s229 + $0x18] sm:$0xf]
    %v237 = vld [vmem:[%s229 + $0x1c] sm:$0xf]
    %v238 = vld [vmem:[%s229 + $0x20] sm:$0xf]
    %v239 = vld [vmem:[%s229 + $0x24] sm:$0xf]
    %v240 = vld [vmem:[%s229 + $0x28] sm:$0xf]
    %v241 = vld [vmem:[%s229 + $0x2c] sm:$0xf]
    %v242 = vld [vmem:[%s229 + $0x30] sm:$0xf]
    %v243 = vld [vmem:[%s229 + $0x34] sm:$0xf]
    %v244 = vld [vmem:[%s229 + $0x38] sm:$0xf]
    %v245 = vld [vmem:[%s229 + $0x3c] sm:$0xf]
    %v246 = vunpack.c.l.bf16 %v230
    %v247 = vunpack.c.l.bf16 %v231
    %v248 = vunpack.c.l.bf16 %v232
    %v249 = vunpack.c.l.bf16 %v233
    %v250 = vunpack.c.l.bf16 %v234
    %v251 = vunpack.c.l.bf16 %v235
    %v252 = vunpack.c.l.bf16 %v236
    %v253 = vunpack.c.l.bf16 %v237
    %v254 = vunpack.c.l.bf16 %v238
    %v255 = vunpack.c.l.bf16 %v239
    %v256 = vunpack.c.l.bf16 %v240
    %v257 = vunpack.c.l.bf16 %v241
    %v258 = vunpack.c.l.bf16 %v242
    %v259 = vunpack.c.l.bf16 %v243
    %v260 = vunpack.c.l.bf16 %v244
    %v261 = vunpack.c.l.bf16 %v245
    %v262 = vmul.f32 %v246, %v186
    %v263 = vmul.f32 %v247, %v188
    %v264 = vmul.f32 %v248, %v191
    %v265 = vmul.f32 %v249, %v193
    %v266 = vmul.f32 %v250, %v196
    %v267 = vmul.f32 %v251, %v198
    %v268 = vmul.f32 %v252, %v201
    %v269 = vmul.f32 %v253, %v203
    %v270 = vmul.f32 %v254, %v206
    %v271 = vmul.f32 %v255, %v208
    %v272 = vmul.f32 %v256, %v211
    %v273 = vmul.f32 %v257, %v213
    %v274 = vmul.f32 %v258, %v216
    %v275 = vmul.f32 %v259, %v218
    %v276 = vmul.f32 %v260, %v221
    %v277 = vmul.f32 %v261, %v223
    %v278 = vadd.f32 %v262, %v263
    %v279 = vadd.f32 %v278, %v264
    %v280 = vadd.f32 %v279, %v265
    %v281 = vadd.f32 %v280, %v266
    %v282 = vadd.f32 %v281, %v267
    %v283 = vadd.f32 %v282, %v268
    %v284 = vadd.f32 %v283, %v269
    %v285 = vadd.f32 %v284, %v270
    %v286 = vadd.f32 %v285, %v271
    %v287 = vadd.f32 %v286, %v272
    %v288 = vadd.f32 %v287, %v273
    %v289 = vadd.f32 %v288, %v274
    %v290 = vadd.f32 %v289, %v275
    %v291 = vadd.f32 %v290, %v276
    %v292 = vadd.f32 %v291, %v277
    %v293 = vrot.slane %v292, 4
    %v294 = vadd.f32 %v292, %v293
    %v295 = vrot.slane %v294, 2
    %v296 = vadd.f32 %v294, %v295
    %v297 = vrot.slane %v296, 1
    %v298 = vadd.f32 %v296, %v297
    %p299 = scmp.eq.s32.totalorder 0, 0
    // Predicated region
    $region22: #{tpu_custom_call.1} parent=1 // pred_check
      %p300 = pneg %p299
    $region23: #{tpu_custom_call.1} parent=1 // pred_check_branch
      %302 = sbr.rel (%p300) target = $region25
    $region24: #{tpu_custom_call.1} parent=1 // pred_region
      %303 = vst [vmem:[#allocation2] sm:$0x1] %v298
    $region25: #{tpu_custom_call.1} parent=1 // pred_fallthru
      _
    %p304 = scmp.gt.s32.totalorder 0, 0
    // Predicated region
    $region26: #{tpu_custom_call.1} parent=1 // pred_check
      %p305 = pneg %p304
    $region27: #{tpu_custom_call.1} parent=1 // pred_check_branch
      %307 = sbr.rel (%p305) target = $region29
    $region28: #{tpu_custom_call.1} parent=1 // pred_region
      %v308 = vld [vmem:[#allocation2] sm:$0x1]
      %v309 = vadd.f32 %v308, %v298
      %310 = vst [vmem:[#allocation2] sm:$0x1] %v309
    $region29: #{tpu_custom_call.1} parent=1 // pred_fallthru
      _
    // Predicated region
    $region30: #{tpu_custom_call.1} parent=1 // pred_check
      %p311 = pneg %p299
    $region31: #{tpu_custom_call.1} parent=1 // pred_check_branch
      %313 = sbr.rel (%p311) target = $region33
    $region32: #{tpu_custom_call.1} parent=1 // pred_region
      %s314 = sld [smem:[#allocation3]]
      %v315 = vld [vmem:[#allocation2] sm:$0x1]
      %v316 = vstv %s314
      %v317 = vadd.f32 %v316, %v315
      %v318 = vxor.u32 %v317, 2147483648
      %v319 = vmul.f32 %v318, 1.442695
      %v320 = vpow.pop %v319
      %v321 = vadd.f32 %v320, 1.0
      %v322 = vrcp.pop %v321
      %v323 = vmul.f32 %v321, %v322
      %v324 = vsub.f32 1.0, %v323
      %v325 = vmul.f32 %v322, %v324
      %v326 = vadd.f32 %v322, %v325
      %vm327 = vweird.f32 %v321
      %vm328 = vweird.f32 %v322
      %vm329 = vmor %vm327, %vm328
      %v330 = vsel %vm329, %v322, %v326
      %v331 = vand.u32 2147483647, %v321
      %vm332 = vcmp.eq.f32.partialorder %v331, 8.507059e+37
      %v333 = vand.u32 %v321, 2147483648
      %v334 = vor.u32 1.1754944e-38, %v333
      %v335 = vsel %vm332, %v334, %v330
      %v336 = vmul.f32 1.0, %v335
      %337 = vst [vmem:[#allocation9] sm:$0x1] %v336
    $region33: #{tpu_custom_call.1} parent=1 // pred_fallthru
      _
    // Predicated region
    $region34: #{tpu_custom_call.1} parent=1 // pred_check
      _
    $region35: #{tpu_custom_call.1} parent=1 // pred_check_branch
      %339 = sbr.rel (0) target = $region37
    $region36: #{tpu_custom_call.1} parent=1 // pred_region
      %341 = vsyncadd [#allocation6], 0
      %s343 = sshll.u32 [#allocation9], 4
      %s344 = int_to_ptr.vmem [resolvable:$true] %s343
      %s345 = sshll.u32 %s3, 4
      %s346 = int_to_ptr.hbm [resolvable:$true] %s345
      %348 = dma.vmem_to_hbm [thread:$0]  %s344, 16, %s346, [#allocation6]
    $region37: #{tpu_custom_call.1} parent=1 // pred_fallthru
      _
    // Predicated region
    $region38: #{tpu_custom_call.1} parent=1 // pred_check
      _
    $region39: #{tpu_custom_call.1} parent=1 // pred_check_branch
      %350 = sbr.rel (0) target = $region41
    $region40: #{tpu_custom_call.1} parent=1 // pred_region
      %352 = dma.done [#allocation6], 16
    $region41: #{tpu_custom_call.1} parent=1 // pred_fallthru
      _
    %353 = vsyncpa [#allocation5], 1
    %354 = vsyncpa [#allocation8], 1
    %355 = vsyncpa [#allocation6], 1

</llo_original>
